<compile_context>
chip_gen: v5e
topology: v5e:2x2
jax: 0.10.0
libtpu: 0.0.40
codegen_flags: <defaults>
</compile_context>

<pallas_src>
import functools
import math

import jax
import jax.numpy as jnp
from jax.experimental import pallas as pl
from jax.experimental.pallas import tpu as pltpu


# ---------------------------------------------------------------------------
# In-kernel softmax over the last axis (exact divide -> rows sum to 1)
# ---------------------------------------------------------------------------

def _softmax_store(att, o_ref):
    m = jnp.max(att, axis=-1, keepdims=True)
    e = jnp.exp(att - m)
    o_ref[...] = (e / jnp.sum(e, axis=-1, keepdims=True)).astype(o_ref.dtype)


# ---------------------------------------------------------------------------
# Kernels: one batch tile per grid step; full (real) T resident in the block.
# ---------------------------------------------------------------------------

def _inner_product_kernel(q_ref, k_ref, o_ref, *, scale):
    # TODO(synk): inner_product_attention_signal is not defined in the
    # reference source; implemented as the standard dot-product signal
    # sum_d(query[b, d] * keys[b, t, d]).
    q = q_ref[...].astype(jnp.float32)                       # [TB, D]
    if scale:
        q = q * (1.0 / math.sqrt(q.shape[-1]))               # fold scale into q
    # keys stay in native dtype; promotion happens per-vreg inside the multiply
    att = jnp.sum(k_ref[...] * q[:, None, :], axis=2)        # [TB, T] f32
    _softmax_store(att, o_ref)


def _general_kernel(q_ref, k_ref, wa_ref, o_ref, *, scale):
    q = q_ref[...].astype(jnp.float32)                       # [TB, D]
    if scale:
        q = q * (1.0 / math.sqrt(q.shape[-1]))               # fold scale into q
    wa = wa_ref[...].astype(jnp.float32)                     # [D, D] VMEM-resident
    qw = jnp.dot(q, wa, preferred_element_type=jnp.float32)  # [TB, D] (MXU)
    att = jnp.sum(k_ref[...] * qw[:, None, :], axis=2)       # [TB, T] f32
    _softmax_store(att, o_ref)


def _concat_kernel(q_ref, k_ref, wq_ref, wk_ref, va_ref, o_ref, *,
                   scale, activation):
    q = q_ref[...].astype(jnp.float32)                       # [TB, D]
    wq = wq_ref[...].astype(jnp.float32)                     # [D, D]
    wk = wk_ref[...].astype(jnp.float32)                     # [D, D]
    va = va_ref[...].astype(jnp.float32)                     # [1, D]
    if scale:
        va = va * (1.0 / math.sqrt(q.shape[-1]))             # att linear in v_a

    k = k_ref[...]                                           # [TB, T, D] native dtype
    tb, t, d = k.shape
    wq_q = jnp.dot(q, wq, preferred_element_type=jnp.float32)  # [TB, D] (MXU)

    if not activation:
        # Identity activation collapses algebraically; the [TB, T, D]
        # intermediate never exists:
        #   att = (q @ Wq) . v_a  +  keys . (Wk @ v_a)
        wk_va = jax.lax.dot_general(                         # [1, D] = (Wk @ v_a)^T
            va, wk, (((1,), (1,)), ((), ())),
            preferred_element_type=jnp.float32)
        q_term = jnp.sum(wq_q * va, axis=1, keepdims=True)   # [TB, 1]
        att = jnp.sum(k * wk_va[:, None, :], axis=2) + q_term
    else:
        # Chunk the Wk matmul output-feature axis so the f32 [TB, T, D]
        # activation intermediate never materializes; each chunk is one tall
        # [TB*T, D] x [D, ec] MXU matmul.  bf16 keys feed the MXU directly.
        k2d = k.reshape(tb * t, d)
        wk_mm = wk if k2d.dtype == jnp.float32 else wk.astype(k2d.dtype)
        # TODO(synk): for sub-f32 keys the weights are cast to the key dtype to
        # keep a single-dtype MXU matmul (tiny precision delta vs f32 weights).
        ec = min(d, 128)
        att = jnp.zeros((tb, t), jnp.float32)
        for e0 in range(0, d, ec):
            wkk = jnp.dot(k2d, wk_mm[:, e0:e0 + ec],
                          preferred_element_type=jnp.float32)      # [TB*T, ec]
            s = wq_q[:, e0:e0 + ec][:, None, :] + wkk.reshape(tb, t, -1)
            if activation == 'relu':
                s = jnp.maximum(s, 0.0)
            elif activation == 'tanh':
                s = jnp.tanh(s)
            elif activation == 'sigmoid':
                s = jax.nn.sigmoid(s)
            att = att + jnp.sum(s * va[:, e0:e0 + ec][:, None, :], axis=2)

    _softmax_store(att, o_ref)


# ---------------------------------------------------------------------------
# Wrapper (generation-aware tiling + pallas_call glue)
# ---------------------------------------------------------------------------

def _vmem_capacity_bytes():
    try:
        return int(pltpu.get_tpu_info().vmem_capacity_bytes)
    except Exception:
        return 64 * 1024 * 1024       # conservative default (v7x per-core VMEM)


def _choose_b_tile(B, T, D, key_itemsize, vmem_bytes):
    """Largest multiple-of-8 batch tile whose worst-case working set fits in
    ~37.5% of physical VMEM (double-buffered keys + f32 chunk intermediates),
    capped so the grid keeps >=4 steps when the batch allows it."""
    budget = (vmem_bytes * 3) // 8                # ~24 MiB v7x, ~48 MiB v5e/v6e
    ec = min(D, 128)
    per_row = 2 * key_itemsize * T * D + 2 * 4 * T * ec + 4 * 4 * T
    fit = max(int(budget // max(per_row, 1)), 1)
    want = max(pl.cdiv(B, 4), 1)                  # >=4 steps -> pipeline + megacore
    return max(8, (min(fit, want) // 8) * 8)


def _vmem_limit_bytes(tb, T, D, key_itemsize, vmem_bytes):
    ec = min(D, 128)
    est = (2 * key_itemsize * tb * T * D          # double-buffered keys blocks
           + 4 * 4 * tb * D                       # query blocks + f32 copy
           + 4 * 4 * D * D + 4 * D                # resident weights / v_a
           + 2 * 4 * tb * T * ec                  # concat chunk intermediates
           + 8 * 4 * tb * T                       # logits / exp / output blocks
           + (2 << 20))                           # headroom
    # Always set explicitly (v5e's scoped default is only 16 MiB); cap under
    # the physical capacity of the current generation.
    return int(min(max(est, 32 << 20), (vmem_bytes * 85) // 100))


def attention_signal(query, keys, params, *, similarity='inner-product',
                     scale=False, activation='relu'):
    """query: [B, D]; keys: [B, T, D] -> softmax attention signal [B, T] (f32)."""
    B, D = query.shape
    Bk, T, Dk = keys.shape
    assert B == Bk and D == Dk

    key_itemsize = jnp.dtype(keys.dtype).itemsize
    vmem_bytes = _vmem_capacity_bytes()
    tb = _choose_b_tile(B, T, D, key_itemsize, vmem_bytes)
    grid = (pl.cdiv(B, tb),)          # partial final batch block handled by Pallas

    q_spec = pl.BlockSpec((tb, D), lambda b: (b, 0))
    # Keys keep their real T (block dims equal to the full array dims are
    # legal), so there is no wrapper-side pad / extra HBM round-trip of keys.
    k_spec = pl.BlockSpec((tb, T, D), lambda b: (b, 0, 0))
    w_spec = pl.BlockSpec((D, D), lambda b: (0, 0))          # VMEM-resident weights
    v_spec = pl.BlockSpec((1, D), lambda b: (0, 0))
    o_spec = pl.BlockSpec((tb, T), lambda b: (b, 0))
    out_shape = jax.ShapeDtypeStruct((B, T), jnp.float32)

    cparams = pltpu.CompilerParams(
        dimension_semantics=("parallel",),     # batch tiles split across TCs (v7x)
        vmem_limit_bytes=_vmem_limit_bytes(tb, T, D, key_itemsize, vmem_bytes))

    if similarity == 'inner-product':
        kern = functools.partial(_inner_product_kernel, scale=scale)
        return pl.pallas_call(
            kern, out_shape=out_shape, grid=grid,
            in_specs=[q_spec, k_spec], out_specs=o_spec,
            compiler_params=cparams,
        )(query, keys)
    if similarity == 'concat':
        kern = functools.partial(_concat_kernel, scale=scale,
                                 activation=activation)
        v_a = params['v_a'].reshape(1, D)      # keep 2-D for TPU layout
        return pl.pallas_call(
            kern, out_shape=out_shape, grid=grid,
            in_specs=[q_spec, k_spec, w_spec, w_spec, v_spec],
            out_specs=o_spec, compiler_params=cparams,
        )(query, keys, params['weights_q'], params['weights_k'], v_a)
    # any other similarity string -> module's else branch ('general')
    kern = functools.partial(_general_kernel, scale=scale)
    return pl.pallas_call(
        kern, out_shape=out_shape, grid=grid,
        in_specs=[q_spec, k_spec, w_spec], out_specs=o_spec,
        compiler_params=cparams,
    )(query, keys, params['weights_a'])


# ---------------------------------------------------------------------------
# Parameter init + pure-JAX reference (HIGHEST-precision contractions)
# ---------------------------------------------------------------------------

def init_attention_signal_params(key, dim, similarity):
    """Deterministic xavier-uniform-style init matching the module's shapes."""
    params = {}
    if similarity == 'inner-product':
        return params
    if similarity == 'concat':
        k1, k2, k3 = jax.random.split(key, 3)
        bound_w = (6.0 / (dim + dim)) ** 0.5
        bound_v = (6.0 / (1 + dim)) ** 0.5
        params['weights_q'] = jax.random.uniform(k1, (dim, dim), jnp.float32,
                                                 -bound_w, bound_w)
        params['weights_k'] = jax.random.uniform(k2, (dim, dim), jnp.float32,
                                                 -bound_w, bound_w)
        params['v_a'] = jax.random.uniform(k3, (dim,), jnp.float32,
                                           -bound_v, bound_v)
        return params
    bound_w = (6.0 / (dim + dim)) ** 0.5
    params['weights_a'] = jax.random.uniform(key, (dim, dim), jnp.float32,
                                             -bound_w, bound_w)
    return params


def _ref_attention_signal(query, keys, params, *, similarity, scale, activation):
    hp = jax.lax.Precision.HIGHEST      # accurate f32 reference contractions
    if similarity == 'inner-product':
        att = jnp.sum(keys * query[:, None, :], axis=2)
    elif similarity == 'concat':
        wq = jnp.einsum('bd,de->be', query, params['weights_q'], precision=hp)
        wk = jnp.einsum('btd,de->bte', keys, params['weights_k'], precision=hp)
        s = wq[:, None, :] + wk
        if activation == 'relu':
            s = jax.nn.relu(s)
        elif activation == 'tanh':
            s = jnp.tanh(s)
        elif activation == 'sigmoid':
            s = jax.nn.sigmoid(s)
        att = jnp.sum(s * params['v_a'][None, None, :], axis=2)
    else:
        qw = jnp.einsum('bd,de->be', query, params['weights_a'], precision=hp)
        att = jnp.einsum('btd,bd->bt', keys, qw, precision=hp)
    if scale:
        att = att / jnp.sqrt(jnp.float32(query.shape[-1]))
    return jax.nn.softmax(att, axis=-1)


if __name__ == "__main__":
    key = jax.random.PRNGKey(0)

    # atol covers the TPU default (bf16-pass) MXU contraction precision inside
    # the kernel vs. a HIGHEST-precision reference; row sums are checked
    # tightly because the softmax normalization is an exact divide.
    ATOL = 2e-2

    configs = [
        # (B,  T,   D,  similarity,      scale, activation, keys dtype)
        (2,  8,   32, 'inner-product', False, 'relu', jnp.float32),
        (2,  8,   32, 'inner-product', True,  'relu', jnp.bfloat16),
        (2,  8,   32, 'general',       False, 'relu', jnp.float32),
        (20, 8,   32, 'general',       True,  'relu', jnp.float32),
        (20, 136, 32, 'general',       False, 'relu', jnp.float32),
        (2,  8,   32, 'concat',        False, 'relu', jnp.float32),
        (20, 136, 32, 'concat',        False, 'tanh', jnp.float32),
        (2,  8,   32, 'concat',        True,  None,   jnp.float32),
    ]

    ok = True
    for idx, (B, T, D, sim, scale, act, kdt) in enumerate(configs):
        dkey = jax.random.fold_in(key, idx)
        kq_i, kk_i, kp_i = jax.random.split(dkey, 3)
        query = jax.random.normal(kq_i, (B, D), dtype=jnp.float32)
        keys = jax.random.normal(kk_i, (B, T, D), dtype=jnp.float32).astype(kdt)
        params = init_attention_signal_params(kp_i, D, sim)

        out = attention_signal(query, keys, params, similarity=sim,
                               scale=scale, activation=act)
        out = jax.block_until_ready(out)

        ref = _ref_attention_signal(query, keys.astype(jnp.float32), params,
                                    similarity=sim, scale=scale, activation=act)

        ok &= out.shape == (B, T)
        ok &= bool(jnp.all(jnp.isfinite(out)))
        ok &= bool(jnp.allclose(out, ref, atol=ATOL, rtol=0))
        ok &= bool(jnp.allclose(jnp.sum(out, axis=-1), 1.0, atol=1e-3))

    if ok:
        print("KERNEL_OK")
    else:
        raise SystemExit("mismatch vs reference")
</pallas_src>

<mosaic_0001>
module attributes {stable_mosaic.version = 11 : i64} {
  func.func @_inner_product_kernel(%arg0: i32, %arg1: memref<8x32xf32, #tpu.memory_space<vmem>>, %arg2: memref<8x8x32xf32, #tpu.memory_space<vmem>>, %arg3: memref<8x8xf32, #tpu.memory_space<vmem>>) attributes {dimension_semantics = [#tpu.dimension_semantics<parallel>], iteration_bounds = array<i64: 1>, scalar_prefetch = 0 : i64, scratch_operands = 0 : i64, tpu.core_type = #tpu.core_type<tc>, window_params = [{transform_indices = @transform_0, window_bounds = array<i64: 8, 32>}, {transform_indices = @transform_1, window_bounds = array<i64: 8, 8, 32>}, {transform_indices = @transform_2, window_bounds = array<i64: 8, 8>}]} {
    %c0 = arith.constant 0 : index
    %c0_0 = arith.constant 0 : index
    %0 = vector.load %arg1[%c0, %c0_0] : memref<8x32xf32, #tpu.memory_space<vmem>>, vector<8x32xf32>
    %c0_1 = arith.constant 0 : index
    %c0_2 = arith.constant 0 : index
    %c0_3 = arith.constant 0 : index
    %1 = vector.load %arg2[%c0_1, %c0_2, %c0_3] : memref<8x8x32xf32, #tpu.memory_space<vmem>>, vector<8x8x32xf32>
    %2 = vector.shape_cast %0 : vector<8x32xf32> to vector<8x1x32xf32>
    %3 = vector.broadcast %2 : vector<8x1x32xf32> to vector<8x8x32xf32>
    %4 = arith.mulf %1, %3 : vector<8x8x32xf32>
    %cst = arith.constant dense<0.000000e+00> : vector<8x8xf32>
    %5 = vector.multi_reduction <add>, %4, %cst [2] : vector<8x8x32xf32> to vector<8x8xf32>
    %cst_4 = arith.constant dense<0xFF800000> : vector<8xf32>
    %6 = vector.multi_reduction <maximumf>, %5, %cst_4 [1] : vector<8x8xf32> to vector<8xf32>
    %7 = vector.shape_cast %6 : vector<8xf32> to vector<8x1xf32>
    %8 = vector.broadcast %7 : vector<8x1xf32> to vector<8x8xf32>
    %9 = arith.subf %5, %8 : vector<8x8xf32>
    %10 = math.exp %9 : vector<8x8xf32>
    %cst_5 = arith.constant dense<0.000000e+00> : vector<8xf32>
    %11 = vector.multi_reduction <add>, %10, %cst_5 [1] : vector<8x8xf32> to vector<8xf32>
    %12 = vector.shape_cast %11 : vector<8xf32> to vector<8x1xf32>
    %13 = vector.broadcast %12 : vector<8x1xf32> to vector<8x8xf32>
    %14 = arith.divf %10, %13 : vector<8x8xf32>
    %c0_6 = arith.constant 0 : index
    %c0_7 = arith.constant 0 : index
    %15 = vector.load %arg3[%c0_6, %c0_7] : memref<8x8xf32, #tpu.memory_space<vmem>>, vector<8x8xf32>
    tpu.vector_store %arg3[%c0_6, %c0_7], %14 {strides = array<i32>} : memref<8x8xf32, #tpu.memory_space<vmem>>, vector<8x8xf32>,
    return
  }
  func.func @transform_0(%arg0: i32) -> (i32, i32) {
    %c0_i32 = arith.constant 0 : i32
    %c0_i32_0 = arith.constant 0 : i32
    return %arg0, %c0_i32 : i32, i32
  }
  func.func @transform_1(%arg0: i32) -> (i32, i32, i32) {
    %c0_i32 = arith.constant 0 : i32
    %c0_i32_0 = arith.constant 0 : i32
    %c0_i32_1 = arith.constant 0 : i32
    return %arg0, %c0_i32, %c0_i32_0 : i32, i32, i32
  }
  func.func @transform_2(%arg0: i32) -> (i32, i32) {
    %c0_i32 = arith.constant 0 : i32
    %c0_i32_0 = arith.constant 0 : i32
    return %arg0, %c0_i32 : i32, i32
  }
}

</mosaic_0001>

<llo_original>
// kernel: tpu_custom_call.1
$region0: #{tpu_custom_call.1}
  #allocation0 [shape = 'u32[]', space=smem, size = 0x4, offset = 0x4, fixed_abs, tag = 'smem constant byte address 0x4 - core index']
  #allocation1 [shape = 'u32[72,128]{1,0:T(1,128)}', space=vmem, size = 0x9000, scoped, tag = 'internal scratch']
  %s0 = inlined_call_operand.hbm [shape: f32[2,32], index: 0, kind: input, shape index: {}]
  %s1 = inlined_call_operand.hbm [shape: f32[2,8,32], index: 1, kind: input, shape index: {}]
  %s2 = inlined_call_operand.hbm [shape: f32[2,8], index: 2, kind: output, shape index: {}]
  %s3 = sld [smem:[#allocation0]]
  $region26: #{tpu_custom_call.1} parent=0
    _
  %s5 = ssub.s32 1, %s3
  %s6 = scalar_select 0, %s5, %s3
  $region1: #{tpu_custom_call.1} parent=0
    #allocation2 [shape = 'u8[4096]{0}', space=vmem, size = 0x1000, scoped, tag = 'input window, operand 0, single buffered']
    #allocation3 [shape = 's32[1]{0}', space=sflag, size = 0x4, scoped, tag = 'scoped memory for tpu_custom_call.1']
    #allocation4 [shape = 's32[1]{0}', space=sflag, size = 0x4, scoped, tag = 'scoped memory for tpu_custom_call.1']
    #allocation5 [shape = 'u8[32768]{0}', space=vmem, size = 0x8000, scoped, tag = 'input window, operand 1, single buffered']
    #allocation6 [shape = 's32[1]{0}', space=sflag, size = 0x4, scoped, tag = 'scoped memory for tpu_custom_call.1']
    #allocation7 [shape = 'u8[4096]{0}', space=vmem, size = 0x1000, scoped, tag = 'output window, operand 0, single buffered']
    %7 = vsyncpa [#allocation3], 0
    %8 = vsyncpa [#allocation6], 0
    %9 = vsyncpa [#allocation4], 0
    // Predicated region
    $region2: #{tpu_custom_call.1} parent=1 // pred_check
      _
    $region3: #{tpu_custom_call.1} parent=1 // pred_check_branch
      %11 = sbr.rel (0) target = $region5
    $region4: #{tpu_custom_call.1} parent=1 // pred_region
      %13 = vsyncadd [#allocation3], 96
      %s14 = sshll.u32 %s0, 4
      %s15 = int_to_ptr.hbm [resolvable:$true] %s14
      %s16 = sshll.u32 [#allocation2], 4
      %s17 = int_to_ptr.vmem [resolvable:$true] %s16
      %22 = dma.hbm_to_vmem [thread:$0]  %s15, 32, %s17, [#allocation3], 32, 32, 2
    $region5: #{tpu_custom_call.1} parent=1 // pred_fallthru
      _
    // Predicated region
    $region6: #{tpu_custom_call.1} parent=1 // pred_check
      _
    $region7: #{tpu_custom_call.1} parent=1 // pred_check_branch
      %24 = sbr.rel (0) target = $region9
    $region8: #{tpu_custom_call.1} parent=1 // pred_region
      %26 = vsyncadd [#allocation6], 768
      %s27 = sshll.u32 %s1, 4
      %s28 = int_to_ptr.hbm [resolvable:$true] %s27
      %s29 = sshll.u32 [#allocation5], 4
      %s30 = int_to_ptr.vmem [resolvable:$true] %s29
      %35 = dma.hbm_to_vmem [thread:$0]  %s28, 256, %s30, [#allocation6], 128, 128, 8
    $region9: #{tpu_custom_call.1} parent=1 // pred_fallthru
      _
    // Predicated region
    $region10: #{tpu_custom_call.1} parent=1 // pred_check
      _
    $region11: #{tpu_custom_call.1} parent=1 // pred_check_branch
      %37 = sbr.rel (0) target = $region13
    $region12: #{tpu_custom_call.1} parent=1 // pred_region
      %39 = dma.done [#allocation3], 128
    $region13: #{tpu_custom_call.1} parent=1 // pred_fallthru
      _
    // Predicated region
    $region14: #{tpu_custom_call.1} parent=1 // pred_check
      _
    $region15: #{tpu_custom_call.1} parent=1 // pred_check_branch
      %41 = sbr.rel (0) target = $region17
    $region16: #{tpu_custom_call.1} parent=1 // pred_region
      %43 = dma.done [#allocation6], 1024
    $region17: #{tpu_custom_call.1} parent=1 // pred_fallthru
      _
    %v44 = vld [vmem:[#allocation2] sm:$0xff]
    %v45 = vld [vmem:[#allocation5] sm:$0xff]
    %v46 = vld [vmem:[#allocation5 + $0x8] sm:$0xff]
    %v47 = vld [vmem:[#allocation5 + $0x10] sm:$0xff]
    %v48 = vld [vmem:[#allocation5 + $0x18] sm:$0xff]
    %v49 = vld [vmem:[#allocation5 + $0x20] sm:$0xff]
    %v50 = vld [vmem:[#allocation5 + $0x28] sm:$0xff]
    %v51 = vld [vmem:[#allocation5 + $0x30] sm:$0xff]
    %v52 = vld [vmem:[#allocation5 + $0x38] sm:$0xff]
    %v54 = vrot.slane %v44, 1
    %v55 = vrot.slane %v44, 2
    %v56 = vrot.slane %v44, 3
    %v57 = vrot.slane %v44, 4
    %v58 = vrot.slane %v44, 5
    %v59 = vrot.slane %v44, 6
    %v60 = vrot.slane %v44, 7
    %v61 = vperm.slane %v44, 0
    %v62 = vperm.slane %v54, 0
    %v63 = vperm.slane %v55, 0
    %v64 = vperm.slane %v56, 0
    %v65 = vperm.slane %v57, 0
    %v66 = vperm.slane %v58, 0
    %v67 = vperm.slane %v59, 0
    %v68 = vperm.slane %v60, 0
    %v77 = vmul.f32 %v45, %v61
    %v78 = vmul.f32 %v46, %v62
    %v79 = vmul.f32 %v47, %v63
    %v80 = vmul.f32 %v48, %v64
    %v81 = vmul.f32 %v49, %v65
    %v82 = vmul.f32 %v50, %v66
    %v83 = vmul.f32 %v51, %v67
    %v84 = vmul.f32 %v52, %v68
    %vm85 = vcmask 261120
    %v86 = vsel %vm85, %v77, 0.0
    %87 = vadd.xlane.f32.xlu0 %v86
    %v88 = vpop.xlane.xlu0 %87
    %v89 = vsel %vm85, %v78, 0.0
    %90 = vadd.xlane.f32.xlu0 %v89
    %v91 = vpop.xlane.xlu0 %90
    %v92 = vsel %vm85, %v79, 0.0
    %93 = vadd.xlane.f32.xlu0 %v92
    %v94 = vpop.xlane.xlu0 %93
    %v95 = vsel %vm85, %v80, 0.0
    %96 = vadd.xlane.f32.xlu0 %v95
    %v97 = vpop.xlane.xlu0 %96
    %v98 = vsel %vm85, %v81, 0.0
    %99 = vadd.xlane.f32.xlu0 %v98
    %v100 = vpop.xlane.xlu0 %99
    %v101 = vsel %vm85, %v82, 0.0
    %102 = vadd.xlane.f32.xlu0 %v101
    %v103 = vpop.xlane.xlu0 %102
    %v104 = vsel %vm85, %v83, 0.0
    %105 = vadd.xlane.f32.xlu0 %v104
    %v106 = vpop.xlane.xlu0 %105
    %v107 = vsel %vm85, %v84, 0.0
    %108 = vadd.xlane.f32.xlu0 %v107
    %v109 = vpop.xlane.xlu0 %108
    %v118 = vlaneseq
    %v119 = vand.u32 %v118, 127
    %v120 = vperm.slane %v88, %v119
    %v121 = vperm.slane %v91, %v119
    %v122 = vperm.slane %v94, %v119
    %v123 = vperm.slane %v97, %v119
    %v124 = vperm.slane %v100, %v119
    %v125 = vperm.slane %v103, %v119
    %v126 = vperm.slane %v106, %v119
    %v127 = vperm.slane %v109, %v119
    %vm128 = vcmask 1041409
    %v129 = vsel %vm128, %v121, %v120
    %vm130 = vcmask 1042434
    %v131 = vsel %vm130, %v122, %v129
    %vm132 = vcmask 1043459
    %v133 = vsel %vm132, %v123, %v131
    %vm134 = vcmask 1044484
    %v135 = vsel %vm134, %v124, %v133
    %vm136 = vcmask 1045509
    %v137 = vsel %vm136, %v125, %v135
    %vm138 = vcmask 1046534
    %v139 = vsel %vm138, %v126, %v137
    %vm140 = vcmask 1047559
    %v141 = vsel %vm140, %v127, %v139
    %vm143 = vcmask 64512
    %v144 = vsel %vm143, %v141, -inf
    %145 = vmax.xlane.f32.xlu0 %v144
    %v146 = vpop.xlane.xlu0 %145
    %v148 = vperm.slane %v146, 0
    %v149 = vperm.slane %v146, 1
    %v150 = vperm.slane %v146, 2
    %v151 = vperm.slane %v146, 3
    %v152 = vperm.slane %v146, 4
    %v153 = vperm.slane %v146, 5
    %v154 = vperm.slane %v146, 6
    %v155 = vperm.slane %v146, 7
    %v164 = vsub.f32 %v88, %v148
    %v165 = vsub.f32 %v91, %v149
    %v166 = vsub.f32 %v94, %v150
    %v167 = vsub.f32 %v97, %v151
    %v168 = vsub.f32 %v100, %v152
    %v169 = vsub.f32 %v103, %v153
    %v170 = vsub.f32 %v106, %v154
    %v171 = vsub.f32 %v109, %v155
    %v172 = vmul.f32 %v164, 1.442695
    %v173 = vpow.pop %v172
    %v174 = vmul.f32 %v165, 1.442695
    %v175 = vpow.pop %v174
    %v176 = vmul.f32 %v166, 1.442695
    %v177 = vpow.pop %v176
    %v178 = vmul.f32 %v167, 1.442695
    %v179 = vpow.pop %v178
    %v180 = vmul.f32 %v168, 1.442695
    %v181 = vpow.pop %v180
    %v182 = vmul.f32 %v169, 1.442695
    %v183 = vpow.pop %v182
    %v184 = vmul.f32 %v170, 1.442695
    %v185 = vpow.pop %v184
    %v186 = vmul.f32 %v171, 1.442695
    %v187 = vpow.pop %v186
    %196 = vset.pattern.permute.xlu0 0
    %197 = vperm.xlu0 %196, %v173
    %v198 = vpop.permute.xlu0 %197
    %199 = vset.pattern.permute.xlu0 0
    %200 = vperm.xlu0 %199, %v175
    %v201 = vpop.permute.xlu0 %200
    %202 = vset.pattern.permute.xlu0 0
    %203 = vperm.xlu0 %202, %v177
    %v204 = vpop.permute.xlu0 %203
    %205 = vset.pattern.permute.xlu0 0
    %206 = vperm.xlu0 %205, %v179
    %v207 = vpop.permute.xlu0 %206
    %208 = vset.pattern.permute.xlu0 0
    %209 = vperm.xlu0 %208, %v181
    %v210 = vpop.permute.xlu0 %209
    %211 = vset.pattern.permute.xlu0 0
    %212 = vperm.xlu0 %211, %v183
    %v213 = vpop.permute.xlu0 %212
    %214 = vset.pattern.permute.xlu0 0
    %215 = vperm.xlu0 %214, %v185
    %v216 = vpop.permute.xlu0 %215
    %217 = vset.pattern.permute.xlu0 0
    %218 = vperm.xlu0 %217, %v187
    %v219 = vpop.permute.xlu0 %218
    %v220 = vperm.slane %v198, %v119
    %v221 = vperm.slane %v201, %v119
    %v222 = vperm.slane %v204, %v119
    %v223 = vperm.slane %v207, %v119
    %v224 = vperm.slane %v210, %v119
    %v225 = vperm.slane %v213, %v119
    %v226 = vperm.slane %v216, %v119
    %v227 = vperm.slane %v219, %v119
    %v228 = vsel %vm128, %v221, %v220
    %v229 = vsel %vm130, %v222, %v228
    %v230 = vsel %vm132, %v223, %v229
    %v231 = vsel %vm134, %v224, %v230
    %v232 = vsel %vm136, %v225, %v231
    %v233 = vsel %vm138, %v226, %v232
    %v234 = vsel %vm140, %v227, %v233
    %v236 = vsel %vm143, %v234, 0.0
    %237 = vadd.xlane.f32.xlu0 %v236
    %v238 = vpop.xlane.xlu0 %237
    %v240 = vperm.slane %v238, 0
    %v241 = vperm.slane %v238, 1
    %v242 = vperm.slane %v238, 2
    %v243 = vperm.slane %v238, 3
    %v244 = vperm.slane %v238, 4
    %v245 = vperm.slane %v238, 5
    %v246 = vperm.slane %v238, 6
    %v247 = vperm.slane %v238, 7
    %v256 = vrcp.pop %v240
    %v257 = vmul.f32 %v240, %v256
    %v258 = vsub.f32 1.0, %v257
    %v259 = vmul.f32 %v256, %v258
    %v260 = vadd.f32 %v256, %v259
    %vm261 = vweird.f32 %v240
    %vm262 = vweird.f32 %v256
    %vm263 = vmor %vm261, %vm262
    %v264 = vsel %vm263, %v256, %v260
    %v265 = vand.u32 2147483647, %v240
    %vm266 = vcmp.eq.f32.partialorder %v265, 8.507059e+37
    %v267 = vand.u32 %v240, 2147483648
    %v268 = vor.u32 1.1754944e-38, %v267
    %v269 = vsel %vm266, %v268, %v264
    %v270 = vmul.f32 %v173, %v269
    %v271 = vrcp.pop %v241
    %v272 = vmul.f32 %v241, %v271
    %v273 = vsub.f32 1.0, %v272
    %v274 = vmul.f32 %v271, %v273
    %v275 = vadd.f32 %v271, %v274
    %vm276 = vweird.f32 %v241
    %vm277 = vweird.f32 %v271
    %vm278 = vmor %vm276, %vm277
    %v279 = vsel %vm278, %v271, %v275
    %v280 = vand.u32 2147483647, %v241
    %vm281 = vcmp.eq.f32.partialorder %v280, 8.507059e+37
    %v282 = vand.u32 %v241, 2147483648
    %v283 = vor.u32 1.1754944e-38, %v282
    %v284 = vsel %vm281, %v283, %v279
    %v285 = vmul.f32 %v175, %v284
    %v286 = vrcp.pop %v242
    %v287 = vmul.f32 %v242, %v286
    %v288 = vsub.f32 1.0, %v287
    %v289 = vmul.f32 %v286, %v288
    %v290 = vadd.f32 %v286, %v289
    %vm291 = vweird.f32 %v242
    %vm292 = vweird.f32 %v286
    %vm293 = vmor %vm291, %vm292
    %v294 = vsel %vm293, %v286, %v290
    %v295 = vand.u32 2147483647, %v242
    %vm296 = vcmp.eq.f32.partialorder %v295, 8.507059e+37
    %v297 = vand.u32 %v242, 2147483648
    %v298 = vor.u32 1.1754944e-38, %v297
    %v299 = vsel %vm296, %v298, %v294
    %v300 = vmul.f32 %v177, %v299
    %v301 = vrcp.pop %v243
    %v302 = vmul.f32 %v243, %v301
    %v303 = vsub.f32 1.0, %v302
    %v304 = vmul.f32 %v301, %v303
    %v305 = vadd.f32 %v301, %v304
    %vm306 = vweird.f32 %v243
    %vm307 = vweird.f32 %v301
    %vm308 = vmor %vm306, %vm307
    %v309 = vsel %vm308, %v301, %v305
    %v310 = vand.u32 2147483647, %v243
    %vm311 = vcmp.eq.f32.partialorder %v310, 8.507059e+37
    %v312 = vand.u32 %v243, 2147483648
    %v313 = vor.u32 1.1754944e-38, %v312
    %v314 = vsel %vm311, %v313, %v309
    %v315 = vmul.f32 %v179, %v314
    %v316 = vrcp.pop %v244
    %v317 = vmul.f32 %v244, %v316
    %v318 = vsub.f32 1.0, %v317
    %v319 = vmul.f32 %v316, %v318
    %v320 = vadd.f32 %v316, %v319
    %vm321 = vweird.f32 %v244
    %vm322 = vweird.f32 %v316
    %vm323 = vmor %vm321, %vm322
    %v324 = vsel %vm323, %v316, %v320
    %v325 = vand.u32 2147483647, %v244
    %vm326 = vcmp.eq.f32.partialorder %v325, 8.507059e+37
    %v327 = vand.u32 %v244, 2147483648
    %v328 = vor.u32 1.1754944e-38, %v327
    %v329 = vsel %vm326, %v328, %v324
    %v330 = vmul.f32 %v181, %v329
    %v331 = vrcp.pop %v245
    %v332 = vmul.f32 %v245, %v331
    %v333 = vsub.f32 1.0, %v332
    %v334 = vmul.f32 %v331, %v333
    %v335 = vadd.f32 %v331, %v334
    %vm336 = vweird.f32 %v245
    %vm337 = vweird.f32 %v331
    %vm338 = vmor %vm336, %vm337
    %v339 = vsel %vm338, %v331, %v335
    %v340 = vand.u32 2147483647, %v245
    %vm341 = vcmp.eq.f32.partialorder %v340, 8.507059e+37
    %v342 = vand.u32 %v245, 2147483648
    %v343 = vor.u32 1.1754944e-38, %v342
    %v344 = vsel %vm341, %v343, %v339
    %v345 = vmul.f32 %v183, %v344
    %v346 = vrcp.pop %v246
    %v347 = vmul.f32 %v246, %v346
    %v348 = vsub.f32 1.0, %v347
    %v349 = vmul.f32 %v346, %v348
    %v350 = vadd.f32 %v346, %v349
    %vm351 = vweird.f32 %v246
    %vm352 = vweird.f32 %v346
    %vm353 = vmor %vm351, %vm352
    %v354 = vsel %vm353, %v346, %v350
    %v355 = vand.u32 2147483647, %v246
    %vm356 = vcmp.eq.f32.partialorder %v355, 8.507059e+37
    %v357 = vand.u32 %v246, 2147483648
    %v358 = vor.u32 1.1754944e-38, %v357
    %v359 = vsel %vm356, %v358, %v354
    %v360 = vmul.f32 %v185, %v359
    %v361 = vrcp.pop %v247
    %v362 = vmul.f32 %v247, %v361
    %v363 = vsub.f32 1.0, %v362
    %v364 = vmul.f32 %v361, %v363
    %v365 = vadd.f32 %v361, %v364
    %vm366 = vweird.f32 %v247
    %vm367 = vweird.f32 %v361
    %vm368 = vmor %vm366, %vm367
    %v369 = vsel %vm368, %v361, %v365
    %v370 = vand.u32 2147483647, %v247
    %vm371 = vcmp.eq.f32.partialorder %v370, 8.507059e+37
    %v372 = vand.u32 %v247, 2147483648
    %v373 = vor.u32 1.1754944e-38, %v372
    %v374 = vsel %vm371, %v373, %v369
    %v375 = vmul.f32 %v187, %v374
    %384 = vset.pattern.permute.xlu0 0
    %385 = vperm.xlu0 %384, %v270
    %v386 = vpop.permute.xlu0 %385
    %387 = vset.pattern.permute.xlu0 0
    %388 = vperm.xlu0 %387, %v285
    %v389 = vpop.permute.xlu0 %388
    %390 = vset.pattern.permute.xlu0 0
    %391 = vperm.xlu0 %390, %v300
    %v392 = vpop.permute.xlu0 %391
    %393 = vset.pattern.permute.xlu0 0
    %394 = vperm.xlu0 %393, %v315
    %v395 = vpop.permute.xlu0 %394
    %396 = vset.pattern.permute.xlu0 0
    %397 = vperm.xlu0 %396, %v330
    %v398 = vpop.permute.xlu0 %397
    %399 = vset.pattern.permute.xlu0 0
    %400 = vperm.xlu0 %399, %v345
    %v401 = vpop.permute.xlu0 %400
    %402 = vset.pattern.permute.xlu0 0
    %403 = vperm.xlu0 %402, %v360
    %v404 = vpop.permute.xlu0 %403
    %405 = vset.pattern.permute.xlu0 0
    %406 = vperm.xlu0 %405, %v375
    %v407 = vpop.permute.xlu0 %406
    %v408 = vperm.slane %v386, %v119
    %v409 = vperm.slane %v389, %v119
    %v410 = vperm.slane %v392, %v119
    %v411 = vperm.slane %v395, %v119
    %v412 = vperm.slane %v398, %v119
    %v413 = vperm.slane %v401, %v119
    %v414 = vperm.slane %v404, %v119
    %v415 = vperm.slane %v407, %v119
    %v416 = vsel %vm128, %v409, %v408
    %v417 = vsel %vm130, %v410, %v416
    %v418 = vsel %vm132, %v411, %v417
    %v419 = vsel %vm134, %v412, %v418
    %v420 = vsel %vm136, %v413, %v419
    %v421 = vsel %vm138, %v414, %v420
    %v422 = vsel %vm140, %v415, %v421
    %424 = vst.msk [vmem:[#allocation7] sm:$0xff] %vm143, %v422
    // Predicated region
    $region18: #{tpu_custom_call.1} parent=1 // pred_check
      _
    $region19: #{tpu_custom_call.1} parent=1 // pred_check_branch
      %426 = sbr.rel (0) target = $region21
    $region20: #{tpu_custom_call.1} parent=1 // pred_region
      %428 = vsyncadd [#allocation4], 96
      %s429 = sshll.u32 [#allocation7], 4
      %s430 = int_to_ptr.vmem [resolvable:$true] %s429
      %s431 = sshll.u32 %s2, 4
      %s432 = int_to_ptr.hbm [resolvable:$true] %s431
      %437 = dma.vmem_to_hbm [thread:$0]  %s430, 32, %s432, [#allocation4], 32, 32, 2
    $region21: #{tpu_custom_call.1} parent=1 // pred_fallthru
      _
    // Predicated region
    $region22: #{tpu_custom_call.1} parent=1 // pred_check
      _
    $region23: #{tpu_custom_call.1} parent=1 // pred_check_branch
      %439 = sbr.rel (0) target = $region25
    $region24: #{tpu_custom_call.1} parent=1 // pred_region
      %441 = dma.done [#allocation4], 128
    $region25: #{tpu_custom_call.1} parent=1 // pred_fallthru
      _
    %442 = vsyncpa [#allocation3], 1
    %443 = vsyncpa [#allocation6], 1
    %444 = vsyncpa [#allocation4], 1

</llo_original>
